<compile_context>
chip_gen: v5e
topology: v5e:2x2
jax: 0.10.0
libtpu: 0.0.40
codegen_flags: <defaults>
</compile_context>

<pallas_src>
import functools

import jax
import jax.numpy as jnp
from jax.experimental import pallas as pl
from jax.experimental.pallas import tpu as pltpu


def _patch_linear_kernel(x_ref, w_ref, b_ref, o_ref):
    # (tm, K) @ (K, tn) on the MXU, f32 accumulate, f32 bias add, cast on store.
    acc = jnp.dot(x_ref[...], w_ref[...], preferred_element_type=jnp.float32)
    o_ref[...] = (acc + b_ref[...].astype(jnp.float32)).astype(o_ref.dtype)


def patch_module_forward(x, weight, bias, patch_size, compute_dtype=jnp.bfloat16,
                         tm_max=512, tn_max=256):
    """x: (B, C, H, W).  weight: (D, C*p*p) [nn.Linear].  bias: (D,).
    Returns (B, num_patches, D), matching PatchModule.forward."""
    B, C, H, W = x.shape
    p = patch_size
    ph, pw = H // p, W // p
    n_patch = ph * pw
    K = C * p * p
    D = weight.shape[0]
    out_dtype = x.dtype

    # divide_into_patches: (B,C,H,W) -> (B*Np, C*p*p), flattened in (c,kh,kw)
    # order exactly like the PyTorch permute/view.  Fused into this jit.
    patches = x.reshape(B, C, ph, p, pw, p)
    patches = patches.transpose(0, 2, 4, 1, 3, 5).reshape(B * n_patch, K)

    if compute_dtype is not None:
        patches = patches.astype(compute_dtype)
        w2 = weight.T.astype(compute_dtype)            # (K, D)
    else:
        w2 = weight.T
    b2 = bias.astype(jnp.float32).reshape(1, D)        # bias stays f32 (v5e-safe)

    M = B * n_patch

    # Tile selection: full dim if small (satisfies the "equals full array dim"
    # rule), otherwise aligned tiles (tm % 16 == 0, tn % 128 == 0 -> vreg/lane
    # dense, no repack copies, unmasked stores for large D).
    tm = M if M <= tm_max else (tm_max // 16) * 16
    tn = D if D <= tn_max else (tn_max // 128) * 128

    grid = (pl.cdiv(M, tm), pl.cdiv(D, tn))

    x_bytes = jnp.dtype(patches.dtype).itemsize
    w_bytes = jnp.dtype(w2.dtype).itemsize
    o_bytes = jnp.dtype(out_dtype).itemsize
    per_step = (tm * K * x_bytes + K * tn * w_bytes + tn * 4 + tm * tn * o_bytes)
    # double-buffered tiles + headroom, clamped to a v7x-safe scoped budget.
    vmem_limit = int(min(max(4 * per_step + (4 << 20), 16 << 20), 32 << 20))

    out = pl.pallas_call(
        _patch_linear_kernel,
        out_shape=jax.ShapeDtypeStruct((M, D), out_dtype),
        grid=grid,
        in_specs=[
            pl.BlockSpec((tm, K), lambda i, j: (i, 0)),
            pl.BlockSpec((K, tn), lambda i, j: (0, j)),
            pl.BlockSpec((1, tn), lambda i, j: (0, j)),
        ],
        out_specs=pl.BlockSpec((tm, tn), lambda i, j: (i, j)),
        compiler_params=pltpu.CompilerParams(
            dimension_semantics=("parallel", "parallel"),
            vmem_limit_bytes=vmem_limit,
        ),
    )(patches, w2, b2)

    return out.reshape(B, n_patch, D)


def _reference(x, weight, bias, patch_size):
    """Pure-JAX reference matching the PyTorch module exactly (f32)."""
    B, C, H, W = x.shape
    p = patch_size
    ph, pw = H // p, W // p
    patches = x.reshape(B, C, ph, p, pw, p)
    patches = patches.transpose(0, 2, 4, 1, 3, 5).reshape(B, ph * pw, C * p * p)
    return patches @ weight.T + bias


if __name__ == "__main__":
    # Small shapes consistent with the module: nn.Linear(3*p*p, hidden) forces C=3.
    B, C, H, W = 2, 3, 16, 16
    patch_size = 4
    hidden_size = 32
    K = 3 * patch_size * patch_size          # 48

    key = jax.random.PRNGKey(0)
    kx, kw, kb = jax.random.split(key, 3)

    x = jax.random.normal(kx, (B, C, H, W), dtype=jnp.float32)
    bound = 1.0 / (K ** 0.5)                 # nn.Linear default init range
    weight = jax.random.uniform(kw, (hidden_size, K), minval=-bound, maxval=bound,
                                dtype=jnp.float32)
    bias = jax.random.uniform(kb, (hidden_size,), minval=-bound, maxval=bound,
                              dtype=jnp.float32)

    fwd = jax.jit(patch_module_forward,
                  static_argnames=("patch_size", "compute_dtype"))

    ref = jax.block_until_ready(_reference(x, weight, bias, patch_size))
    n_patch = (H // patch_size) * (W // patch_size)

    # f32 path (tight tolerance)
    out_f32 = jax.block_until_ready(
        fwd(x, weight, bias, patch_size=patch_size, compute_dtype=None))
    assert out_f32.shape == (B, n_patch, hidden_size)
    assert jnp.allclose(out_f32, ref, atol=1e-4, rtol=1e-4), "f32 mismatch vs reference"

    # bf16-operand path (f32 accumulation; loosened tolerance per review)
    out_bf16 = jax.block_until_ready(
        fwd(x, weight, bias, patch_size=patch_size, compute_dtype=jnp.bfloat16))
    assert out_bf16.shape == (B, n_patch, hidden_size)
    assert jnp.allclose(out_bf16, ref, atol=2e-2, rtol=2e-2), "bf16 mismatch vs reference"

    print("KERNEL_OK")
</pallas_src>

<mosaic_0001>
module attributes {stable_mosaic.version = 11 : i64} {
  func.func @_patch_linear_kernel(%arg0: i32, %arg1: i32, %arg2: memref<32x48xf32, #tpu.memory_space<vmem>>, %arg3: memref<48x32xf32, #tpu.memory_space<vmem>>, %arg4: memref<1x32xf32, #tpu.memory_space<vmem>>, %arg5: memref<32x32xf32, #tpu.memory_space<vmem>>) attributes {dimension_semantics = [#tpu.dimension_semantics<parallel>, #tpu.dimension_semantics<parallel>], iteration_bounds = array<i64: 1, 1>, scalar_prefetch = 0 : i64, scratch_operands = 0 : i64, tpu.core_type = #tpu.core_type<tc>, window_params = [{transform_indices = @transform_0, window_bounds = array<i64: 32, 48>}, {transform_indices = @transform_1, window_bounds = array<i64: 48, 32>}, {transform_indices = @transform_2, window_bounds = array<i64: 1, 32>}, {transform_indices = @transform_3, window_bounds = array<i64: 32, 32>}]} {
    %c0 = arith.constant 0 : index
    %c0_0 = arith.constant 0 : index
    %0 = vector.load %arg2[%c0, %c0_0] : memref<32x48xf32, #tpu.memory_space<vmem>>, vector<32x48xf32>
    %c0_1 = arith.constant 0 : index
    %c0_2 = arith.constant 0 : index
    %1 = vector.load %arg3[%c0_1, %c0_2] : memref<48x32xf32, #tpu.memory_space<vmem>>, vector<48x32xf32>
    %cst = arith.constant dense<0.000000e+00> : vector<32x32xf32>
    %2 = tpu.matmul %0, %1, %cst {dimension_numbers = #tpu.dot_dimension_numbers<[1], [0], [0], [1], [0, 0, 1, 1], [], []>} : vector<32x48xf32>, vector<48x32xf32>, vector<32x32xf32> -> vector<32x32xf32>
    %c0_3 = arith.constant 0 : index
    %c0_4 = arith.constant 0 : index
    %3 = vector.load %arg4[%c0_3, %c0_4] : memref<1x32xf32, #tpu.memory_space<vmem>>, vector<1x32xf32>
    %4 = vector.broadcast %3 : vector<1x32xf32> to vector<32x32xf32>
    %5 = arith.addf %2, %4 : vector<32x32xf32>
    %c0_5 = arith.constant 0 : index
    %c0_6 = arith.constant 0 : index
    %6 = vector.load %arg5[%c0_5, %c0_6] : memref<32x32xf32, #tpu.memory_space<vmem>>, vector<32x32xf32>
    tpu.vector_store %arg5[%c0_5, %c0_6], %5 {strides = array<i32>} : memref<32x32xf32, #tpu.memory_space<vmem>>, vector<32x32xf32>,
    return
  }
  func.func @transform_0(%arg0: i32, %arg1: i32) -> (i32, i32) {
    %c0_i32 = arith.constant 0 : i32
    %c0_i32_0 = arith.constant 0 : i32
    return %arg0, %c0_i32 : i32, i32
  }
  func.func @transform_1(%arg0: i32, %arg1: i32) -> (i32, i32) {
    %c0_i32 = arith.constant 0 : i32
    %c0_i32_0 = arith.constant 0 : i32
    return %c0_i32, %arg1 : i32, i32
  }
  func.func @transform_2(%arg0: i32, %arg1: i32) -> (i32, i32) {
    %c0_i32 = arith.constant 0 : i32
    %c0_i32_0 = arith.constant 0 : i32
    return %c0_i32, %arg1 : i32, i32
  }
  func.func @transform_3(%arg0: i32, %arg1: i32) -> (i32, i32) {
    %c0_i32 = arith.constant 0 : i32
    return %arg0, %arg1 : i32, i32
  }
}

</mosaic_0001>

<llo_original>
// kernel: patch_module_forward.1
$region0: #{patch_module_forward.1}
  #allocation0 [shape = 'u32[]', space=smem, size = 0x4, offset = 0x4, fixed_abs, tag = 'smem constant byte address 0x4 - core index']
  #allocation1 [shape = 'u32[72,128]{1,0:T(1,128)}', space=vmem, size = 0x9000, scoped, tag = 'internal scratch']
  %s0 = inlined_call_operand.vmem [shape: f32[32,48], index: 0, kind: input, shape index: {}]
  %s1 = inlined_call_operand.vmem [shape: f32[48,32], index: 1, kind: input, shape index: {}]
  %s2 = inlined_call_operand.vmem [shape: f32[1,32], index: 2, kind: input, shape index: {}]
  %s3 = inlined_call_operand.hbm [shape: f32[32,32], index: 3, kind: output, shape index: {}]
  %s4 = sld [smem:[#allocation0]]
  $region22: #{patch_module_forward.1} parent=0
    _
  %s6 = ssub.s32 1, %s4
  %s7 = scalar_select 0, %s6, %s4
  $region1: #{patch_module_forward.1} parent=0
    #allocation2 [shape = 'u8[16384]{0}', space=vmem, size = 0x4000, scoped, tag = 'output window, operand 0, single buffered']
    #allocation3 [shape = 's32[1]{0}', space=sflag, size = 0x4, scoped, tag = 'scoped memory for patch_module_forward.1']
    %8 = vsyncpa [#allocation3], 0
    // Predicated region
    $region2: #{patch_module_forward.1} parent=1 // pred_check
      _
    $region3: #{patch_module_forward.1} parent=1 // pred_check_branch
      %10 = sbr.rel (0) target = $region5
    $region4: #{patch_module_forward.1} parent=1 // pred_region
      _
    $region5: #{patch_module_forward.1} parent=1 // pred_fallthru
      _
    // Predicated region
    $region6: #{patch_module_forward.1} parent=1 // pred_check
      _
    $region7: #{patch_module_forward.1} parent=1 // pred_check_branch
      %12 = sbr.rel (0) target = $region9
    $region8: #{patch_module_forward.1} parent=1 // pred_region
      _
    $region9: #{patch_module_forward.1} parent=1 // pred_fallthru
      _
    // Predicated region
    $region10: #{patch_module_forward.1} parent=1 // pred_check
      _
    $region11: #{patch_module_forward.1} parent=1 // pred_check_branch
      %14 = sbr.rel (0) target = $region13
    $region12: #{patch_module_forward.1} parent=1 // pred_region
      _
    $region13: #{patch_module_forward.1} parent=1 // pred_fallthru
      _
    %v15 = vld [vmem:[%s0] sm:$0xff]
    %v16 = vld [vmem:[%s0 + $0x8] sm:$0xff]
    %v17 = vld [vmem:[%s0 + $0x10] sm:$0xff]
    %v18 = vld [vmem:[%s0 + $0x18] sm:$0xff]
    %v19 = vld [vmem:[%s1] sm:$0xff]
    %v20 = vld [vmem:[%s1 + $0x8] sm:$0xff]
    %v21 = vld [vmem:[%s1 + $0x10] sm:$0xff]
    %v22 = vld [vmem:[%s1 + $0x18] sm:$0xff]
    %v23 = vld [vmem:[%s1 + $0x20] sm:$0xff]
    %v24 = vld [vmem:[%s1 + $0x28] sm:$0xff]
    %v25 = vld [vmem:[%s2] sm:$0x1]
    %v27 = vperm.slane %v25, 0
    %vm29 = vcmask 392192
    %v31 = vsel %vm29, %v15, 0
    %v34 = vsel %vm29, %v16, 0
    %v37 = vsel %vm29, %v17, 0
    %v40 = vsel %vm29, %v18, 0
    %42 = vmatpush.msra.mxu0 0.0
    %43 = vmatpush.msra.mxu0 0.0
    %44 = vmatpush.msra.mxu0 0.0
    %45 = vmatpush.msra.mxu0 0.0
    %46 = vmatpush.msra.mxu0 0.0
    %47 = vmatpush.msra.mxu0 0.0
    %48 = vmatpush.msra.mxu0 0.0
    %49 = vmatpush.msra.mxu0 0.0
    %50 = vmatpush.msra.mxu0 0.0
    %51 = vmatpush.msra.mxu0 0.0
    %52 = vmatpush.msra.mxu0 %v24
    %53 = vmatpush.msra.mxu0 %v23
    %54 = vmatpush.msra.mxu0 %v22
    %55 = vmatpush.msra.mxu0 %v21
    %56 = vmatpush.msra.mxu0 %v20
    %57 = vmatpush.msra.mxu0 %v19
    %58 = vmatmul.f32.gmra.mxu0 %v31
    %v59 = vpop.f32.mrf.mxu0
    %v60 = vadd.f32 %v27, %v59
    %61 = vmatmul.f32.gmra.mxu0 %v34
    %v62 = vpop.f32.mrf.mxu0
    %v63 = vadd.f32 %v27, %v62
    %64 = vmatmul.f32.gmra.mxu0 %v37
    %v65 = vpop.f32.mrf.mxu0
    %v66 = vadd.f32 %v27, %v65
    %67 = vmatmul.f32.gmra.mxu0 %v40
    %v68 = vpop.f32.mrf.mxu0
    %v69 = vadd.f32 %v27, %v68
    %70 = vdwg.mxu0
    %vm71 = vcmask 261120
    %72 = vst.msk [vmem:[#allocation2] sm:$0xff] %vm71, %v60
    %73 = vst.msk [vmem:[#allocation2 + $0x8] sm:$0xff] %vm71, %v63
    %74 = vst.msk [vmem:[#allocation2 + $0x10] sm:$0xff] %vm71, %v66
    %75 = vst.msk [vmem:[#allocation2 + $0x18] sm:$0xff] %vm71, %v69
    // Predicated region
    $region14: #{patch_module_forward.1} parent=1 // pred_check
      _
    $region15: #{patch_module_forward.1} parent=1 // pred_check_branch
      %77 = sbr.rel (0) target = $region17
    $region16: #{patch_module_forward.1} parent=1 // pred_region
      %79 = vsyncadd [#allocation3], 0
      %s80 = sshll.u32 [#allocation2], 4
      %s81 = int_to_ptr.vmem [resolvable:$true] %s80
      %s82 = sshll.u32 %s3, 4
      %s83 = int_to_ptr.hbm [resolvable:$true] %s82
      %88 = dma.vmem_to_hbm [thread:$0]  %s81, 512, %s83, [#allocation3], 128, 128, 8
    $region17: #{patch_module_forward.1} parent=1 // pred_fallthru
      _
    // Predicated region
    $region18: #{patch_module_forward.1} parent=1 // pred_check
      _
    $region19: #{patch_module_forward.1} parent=1 // pred_check_branch
      %90 = sbr.rel (0) target = $region21
    $region20: #{patch_module_forward.1} parent=1 // pred_region
      %92 = dma.done [#allocation3], 512
    $region21: #{patch_module_forward.1} parent=1 // pred_fallthru
      _
    %93 = vsyncpa [#allocation3], 1

</llo_original>
